<compile_context>
chip_gen: v7x
topology: tpu7x:2x2x1
jax: 0.10.0
libtpu: 0.0.40
codegen_flags: <defaults>
</compile_context>

<pallas_src>
import jax
import jax.numpy as jnp
from jax.experimental import pallas as pl
from jax.experimental.pallas import tpu as pltpu


# --------------------------------------------------------------------------- #
# Kernels
# --------------------------------------------------------------------------- #
def _laplacian_power_kernel(x_ref, ev_ref, logev_ref, t_ref, p_ref, lam0_ref, o_ref):
    """with_power=True body: exactly one exp per output element."""
    x = x_ref[...].astype(jnp.float32)           # (tk, Cp)
    ev = ev_ref[...].astype(jnp.float32)         # (tk, 1)
    logev = logev_ref[...].astype(jnp.float32)   # (tk, 1)  log(ev) (0 where ev == 0)
    t_abs = t_ref[...]                           # (1, Cp)  |diffusion_time|  (f32)
    power = p_ref[...]                           # (1, Cp)  2*sigmoid(k) - 1  (f32)
    lam0 = lam0_ref[...]                         # (1, Cp)  pow(0, power)     (f32)

    # pow + exp fused into a single EUP exp:  ev^p * exp(-ev*|t|) = exp(p*log(ev) - ev*|t|)
    coef = jnp.exp(power * logev - ev * t_abs)   # (tk, Cp)
    # lambda_0 row of a Laplacian spectrum (ev == 0): diffusion factor is 1,
    # pow(0, p) is {0, 1, inf} (precomputed per channel in the wrapper).
    coef = jnp.where(ev > 0.0, coef, lam0)
    o_ref[...] = (coef * x).astype(o_ref.dtype)


def _laplacian_diffusion_kernel(x_ref, ev_ref, t_ref, o_ref):
    """with_power=False body: diffusion term only."""
    x = x_ref[...].astype(jnp.float32)
    ev = ev_ref[...].astype(jnp.float32)
    t_abs = t_ref[...]
    o_ref[...] = (jnp.exp(-ev * t_abs) * x).astype(o_ref.dtype)


# --------------------------------------------------------------------------- #
# Tiling helpers
# --------------------------------------------------------------------------- #
def _default_tile_bytes():
    """~2 MiB per tile on v7x (64 MiB VMEM / 2 TCs, EUP-bound); ~4 MiB elsewhere
    (v5e/v6e have 128 MiB physical VMEM and are HBM-bound -> bigger tiles)."""
    try:
        kind = jax.devices()[0].device_kind.lower()
    except Exception:
        return 2 << 20
    return (2 << 20) if "v7" in kind else (4 << 20)


def _pick_block_rows(K, B, Cp, itemsize, n_cols, *, tile_bytes, min_grid_steps=8):
    """Pick the K-tile row count.

    - Large enough to amortize the ~0.35us per-step overhead.
    - Small enough that one step's x tile PLUS the lane-padded (tk,1)->(tk,128)
      f32 eigenvalue column(s) stay within `tile_bytes`.
    - Capped so the total grid has >= min_grid_steps steps when the problem
      allows it (2 TensorCores on v7x + double-buffer overlap everywhere).
    """
    sublane = 8 if itemsize >= 4 else 16
    bytes_per_row = Cp * itemsize + n_cols * 128 * 4       # x row + padded ev column rows
    rows = max(sublane, tile_bytes // max(1, bytes_per_row))
    k_steps_wanted = -(-min_grid_steps // max(1, B))        # ceil(min_steps / B)
    cap = K // k_steps_wanted
    if cap >= sublane:
        rows = min(rows, cap)
    rows = max(sublane, (rows // sublane) * sublane)
    return K if rows >= K else int(rows)


# --------------------------------------------------------------------------- #
# Wrapper
# --------------------------------------------------------------------------- #
def laplacian_block(x, evals, diffusion_time, laplacian_power=None, *,
                    with_power=True, max_time=False,
                    block_rows=None, tile_bytes=None):
    """x: (K, C) or (B, K, C); evals: (K,) or (B, K); params: (C,)."""
    x = jnp.asarray(x)
    evals = jnp.asarray(evals)

    squeeze_batch = (x.ndim == 2)
    if squeeze_batch:
        x = x[None]
    if x.ndim != 3:
        raise ValueError(f"x must be (K, C) or (B, K, C), got {x.shape}")
    B, K, C = x.shape

    if evals.ndim == 1:
        evals_b = evals[None]
    elif evals.ndim == 2:
        evals_b = evals
    else:
        raise ValueError(f"evals must be (K,) or (B, K), got {evals.shape}")
    Be, Ke = evals_b.shape
    if Ke != K or Be not in (1, B):
        raise ValueError(f"evals shape {evals.shape} incompatible with x shape {x.shape}")

    dt = jnp.asarray(diffusion_time, jnp.float32)
    if dt.shape != (C,):
        raise ValueError(f"diffusion_time has wrong shape {dt.shape}, expected ({C},)")
    if with_power:
        if laplacian_power is None:
            raise ValueError("laplacian_power must be provided when with_power=True")
        lp = jnp.asarray(laplacian_power, jnp.float32)
        if lp.shape != (C,):
            raise ValueError(f"laplacian_power has wrong shape {lp.shape}, expected ({C},)")

    # ---- per-channel precompute (hoisted out of the kernel; saves EUP work) ----
    if max_time:
        dt = max_time * jax.nn.sigmoid(dt)
    t_abs = jnp.abs(dt)                                               # (C,)
    if with_power:
        power = 2.0 * jax.nn.sigmoid(lp) - 1.0                        # (C,)
        # pow(0, p): 0 if p>0, 1 if p==0, +inf if p<0 (matches jnp/torch pow).
        lam0 = jnp.where(power > 0.0, 0.0,
                         jnp.where(power == 0.0, 1.0, jnp.inf))       # (C,)

    # ---- lane-dense channel padding (C -> multiple of 128) ----
    Cp = ((C + 127) // 128) * 128
    pad_c = Cp - C

    def _pad_row(r, fill):
        r = r.reshape(1, C).astype(jnp.float32)
        if pad_c:
            r = jnp.pad(r, ((0, 0), (0, pad_c)), constant_values=fill)
        return r

    t_row = _pad_row(t_abs, 1.0)
    if with_power:
        p_row = _pad_row(power, 1.0)
        lam0_row = _pad_row(lam0, 0.0)

    # ---- tiling over K ----
    itemsize = jnp.dtype(x.dtype).itemsize
    n_cols = 2 if with_power else 1          # ev (+ log ev) columns
    if tile_bytes is None:
        tile_bytes = _default_tile_bytes()
    tk = (block_rows if block_rows is not None
          else _pick_block_rows(K, B, Cp, itemsize, n_cols, tile_bytes=tile_bytes))
    tk = int(min(tk, K))
    Kp = ((K + tk - 1) // tk) * tk
    pad_k = Kp - K

    if pad_c:
        x = jnp.pad(x, ((0, 0), (0, 0), (0, pad_c)))
    ev_f = evals_b.astype(jnp.float32)
    if pad_k:
        x = jnp.pad(x, ((0, 0), (0, pad_k), (0, 0)))
        ev_f = jnp.pad(ev_f, ((0, 0), (0, pad_k)), constant_values=1.0)

    # Per-K precompute: log(ev) once per row (kept out of the per-element path).
    ev_col = ev_f[..., None]                                           # (Be, Kp, 1)
    logev_col = jnp.log(jnp.where(ev_f > 0.0, ev_f, 1.0))[..., None]   # (Be, Kp, 1)

    # ---- grid / specs ----
    n_k = Kp // tk
    grid = (B, n_k)
    if Be == B:
        col_map = lambda b, i: (b, i, 0)
    else:
        col_map = lambda b, i: (0, i, 0)

    x_spec = pl.BlockSpec((None, tk, Cp), lambda b, i: (b, i, 0))
    col_spec = pl.BlockSpec((None, tk, 1), col_map)
    row_spec = pl.BlockSpec((1, Cp), lambda b, i: (0, 0))     # resident across the grid
    out_spec = pl.BlockSpec((None, tk, Cp), lambda b, i: (b, i, 0))

    # ---- explicit VMEM budget (accounts for (tk,1)->(tk,128) lane padding) ----
    n_rows_params = 3 if with_power else 1
    vmem_need = 2 * (2 * tk * Cp * itemsize            # x + out tiles, double-buffered
                     + n_cols * tk * 128 * 4           # lane-padded eigenvalue columns
                     + n_rows_params * 8 * Cp * 4)     # sublane-padded parameter rows
    vmem_limit = int(min(max(int(1.5 * vmem_need), 4 << 20), 48 << 20))

    if with_power:
        kernel = _laplacian_power_kernel
        in_specs = [x_spec, col_spec, col_spec, row_spec, row_spec, row_spec]
        operands = (x, ev_col, logev_col, t_row, p_row, lam0_row)
    else:
        kernel = _laplacian_diffusion_kernel
        in_specs = [x_spec, col_spec, row_spec]
        operands = (x, ev_col, t_row)

    out = pl.pallas_call(
        kernel,
        out_shape=jax.ShapeDtypeStruct((B, Kp, Cp), x.dtype),
        grid_spec=pltpu.PrefetchScalarGridSpec(
            num_scalar_prefetch=0,
            grid=grid,
            in_specs=in_specs,
            out_specs=out_spec,
        ),
        compiler_params=pltpu.CompilerParams(
            dimension_semantics=("parallel", "parallel"),   # batch x K-tiles independent
            vmem_limit_bytes=vmem_limit),
    )(*operands)

    out = out[:, :K, :C]
    if squeeze_batch:
        out = out[0]
    return out


# --------------------------------------------------------------------------- #
# Pure-JAX reference mirroring the PyTorch forward
# --------------------------------------------------------------------------- #
def laplacian_block_ref(x, evals, diffusion_time, laplacian_power,
                        with_power=True, max_time=False):
    if max_time:
        diffusion_time = max_time * jax.nn.sigmoid(diffusion_time)
    diffusion_coefs = jnp.exp(-evals[..., None] * jnp.abs(diffusion_time))
    if with_power:
        lambda_coefs = jnp.power(evals[..., None],
                                 2.0 * jax.nn.sigmoid(laplacian_power) - 1.0)
        return lambda_coefs * diffusion_coefs * x
    return diffusion_coefs * x


# --------------------------------------------------------------------------- #
# Self-test
# --------------------------------------------------------------------------- #
if __name__ == "__main__":
    key = jax.random.PRNGKey(0)
    # B spectral slabs of K coefficients x C channels (C=128 -> lane-dense).
    B, K, C = 2, 256, 128

    kx, ke, kp, kt = jax.random.split(key, 4)
    x = jax.random.normal(kx, (B, K, C), dtype=jnp.float32)
    # Nonnegative, sorted eigenvalues; include lambda_0 = 0 like a real Laplacian.
    evals = jnp.sort(jnp.abs(jax.random.normal(ke, (B, K), dtype=jnp.float32)), axis=-1)
    evals = evals.at[:, 0].set(0.0)

    laplacian_power = 0.1 * jax.random.normal(kp, (C,), dtype=jnp.float32)
    diffusion_time = jnp.full((C,), 1e-4, dtype=jnp.float32) + \
        0.01 * jnp.abs(jax.random.normal(kt, (C,), dtype=jnp.float32))

    # 1) Batched path, with_power=True (grid (B, K//tk), both axes parallel).
    out = jax.block_until_ready(
        laplacian_block(x, evals, diffusion_time, laplacian_power))
    ref = laplacian_block_ref(x, evals, diffusion_time, laplacian_power)
    assert out.shape == (B, K, C)
    assert bool(jnp.allclose(out, ref, atol=1e-5, rtol=1e-5)), "with_power=True mismatch"

    # 2) Unbatched (K, C) input, diffusion-only kernel (with_power=False).
    out2 = jax.block_until_ready(
        laplacian_block(x[0], evals[0], diffusion_time, with_power=False))
    ref2 = laplacian_block_ref(x[0], evals[0], diffusion_time, laplacian_power,
                               with_power=False)
    assert bool(jnp.allclose(out2, ref2, atol=1e-5, rtol=1e-5)), "with_power=False mismatch"

    # 3) Non-128-aligned channel count exercises the lane-padding path.
    C3 = 96
    out3 = jax.block_until_ready(
        laplacian_block(x[..., :C3], evals, diffusion_time[:C3], laplacian_power[:C3]))
    ref3 = laplacian_block_ref(x[..., :C3], evals, diffusion_time[:C3],
                               laplacian_power[:C3])
    assert bool(jnp.allclose(out3, ref3, atol=1e-5, rtol=1e-5)), "C-padding mismatch"

    print("KERNEL_OK")
</pallas_src>

<mosaic_0001>
module attributes {stable_mosaic.version = 11 : i64} {
  func.func @_laplacian_power_kernel(%arg0: i32, %arg1: i32, %arg2: memref<1x64x128xf32, #tpu.memory_space<vmem>>, %arg3: memref<1x64x1xf32, #tpu.memory_space<vmem>>, %arg4: memref<1x64x1xf32, #tpu.memory_space<vmem>>, %arg5: memref<1x128xf32, #tpu.memory_space<vmem>>, %arg6: memref<1x128xf32, #tpu.memory_space<vmem>>, %arg7: memref<1x128xf32, #tpu.memory_space<vmem>>, %arg8: memref<1x64x128xf32, #tpu.memory_space<vmem>>) attributes {dimension_semantics = [#tpu.dimension_semantics<parallel>, #tpu.dimension_semantics<parallel>], iteration_bounds = array<i64: 2, 4>, scalar_prefetch = 0 : i64, scratch_operands = 0 : i64, tpu.core_type = #tpu.core_type<tc>, window_params = [{transform_indices = @transform_0, window_bounds = array<i64: 1, 64, 128>}, {transform_indices = @transform_1, window_bounds = array<i64: 1, 64, 1>}, {transform_indices = @transform_2, window_bounds = array<i64: 1, 64, 1>}, {pipeline_mode = #tpu.pipeline_mode<synchronous>, transform_indices = @transform_3, window_bounds = array<i64: 1, 128>}, {pipeline_mode = #tpu.pipeline_mode<synchronous>, transform_indices = @transform_4, window_bounds = array<i64: 1, 128>}, {pipeline_mode = #tpu.pipeline_mode<synchronous>, transform_indices = @transform_5, window_bounds = array<i64: 1, 128>}, {transform_indices = @transform_6, window_bounds = array<i64: 1, 64, 128>}]} {
    %c0 = arith.constant 0 : index
    %c0_0 = arith.constant 0 : index
    %c0_1 = arith.constant 0 : index
    %0 = vector.load %arg2[%c0, %c0_0, %c0_1] : memref<1x64x128xf32, #tpu.memory_space<vmem>>, vector<1x64x128xf32>
    %1 = vector.shape_cast %0 : vector<1x64x128xf32> to vector<64x128xf32>
    %c0_2 = arith.constant 0 : index
    %c0_3 = arith.constant 0 : index
    %c0_4 = arith.constant 0 : index
    %2 = vector.load %arg3[%c0_2, %c0_3, %c0_4] : memref<1x64x1xf32, #tpu.memory_space<vmem>>, vector<1x64x1xf32>
    %3 = vector.shape_cast %2 : vector<1x64x1xf32> to vector<64x1xf32>
    %c0_5 = arith.constant 0 : index
    %c0_6 = arith.constant 0 : index
    %c0_7 = arith.constant 0 : index
    %4 = vector.load %arg4[%c0_5, %c0_6, %c0_7] : memref<1x64x1xf32, #tpu.memory_space<vmem>>, vector<1x64x1xf32>
    %5 = vector.shape_cast %4 : vector<1x64x1xf32> to vector<64x1xf32>
    %c0_8 = arith.constant 0 : index
    %c0_9 = arith.constant 0 : index
    %6 = vector.load %arg5[%c0_8, %c0_9] : memref<1x128xf32, #tpu.memory_space<vmem>>, vector<1x128xf32>
    %c0_10 = arith.constant 0 : index
    %c0_11 = arith.constant 0 : index
    %7 = vector.load %arg6[%c0_10, %c0_11] : memref<1x128xf32, #tpu.memory_space<vmem>>, vector<1x128xf32>
    %c0_12 = arith.constant 0 : index
    %c0_13 = arith.constant 0 : index
    %8 = vector.load %arg7[%c0_12, %c0_13] : memref<1x128xf32, #tpu.memory_space<vmem>>, vector<1x128xf32>
    %9 = vector.broadcast %7 : vector<1x128xf32> to vector<64x128xf32>
    %10 = vector.broadcast %5 : vector<64x1xf32> to vector<64x128xf32>
    %11 = arith.mulf %9, %10 : vector<64x128xf32>
    %12 = vector.broadcast %3 : vector<64x1xf32> to vector<64x128xf32>
    %13 = vector.broadcast %6 : vector<1x128xf32> to vector<64x128xf32>
    %14 = arith.mulf %12, %13 : vector<64x128xf32>
    %15 = arith.subf %11, %14 : vector<64x128xf32>
    %16 = math.exp %15 : vector<64x128xf32>
    %cst = arith.constant 0.000000e+00 : f32
    %17 = vector.broadcast %cst : f32 to vector<64x1xf32>
    %18 = arith.cmpf ogt, %3, %17 : vector<64x1xf32>
    %19 = vector.shape_cast %18 : vector<64x1xi1> to vector<64x1xi1>
    %20 = vector.broadcast %19 : vector<64x1xi1> to vector<64x128xi1>
    %21 = vector.shape_cast %8 : vector<1x128xf32> to vector<1x128xf32>
    %22 = vector.broadcast %21 : vector<1x128xf32> to vector<64x128xf32>
    %23 = arith.select %20, %16, %22 : vector<64x128xi1>, vector<64x128xf32>
    %24 = arith.mulf %23, %1 : vector<64x128xf32>
    %c0_14 = arith.constant 0 : index
    %c0_15 = arith.constant 0 : index
    %c0_16 = arith.constant 0 : index
    %25 = vector.load %arg8[%c0_14, %c0_15, %c0_16] : memref<1x64x128xf32, #tpu.memory_space<vmem>>, vector<1x64x128xf32>
    %26 = vector.shape_cast %25 : vector<1x64x128xf32> to vector<64x128xf32>
    %27 = vector.shape_cast %24 : vector<64x128xf32> to vector<1x64x128xf32>
    tpu.vector_store %arg8[%c0_14, %c0_15, %c0_16], %27 {strides = array<i32>} : memref<1x64x128xf32, #tpu.memory_space<vmem>>, vector<1x64x128xf32>,
    return
  }
  func.func @transform_0(%arg0: i32, %arg1: i32) -> (i32, i32, i32) {
    %c0_i32 = arith.constant 0 : i32
    %c0_i32_0 = arith.constant 0 : i32
    return %arg0, %arg1, %c0_i32 : i32, i32, i32
  }
  func.func @transform_1(%arg0: i32, %arg1: i32) -> (i32, i32, i32) {
    %c0_i32 = arith.constant 0 : i32
    %c0_i32_0 = arith.constant 0 : i32
    return %arg0, %arg1, %c0_i32 : i32, i32, i32
  }
  func.func @transform_2(%arg0: i32, %arg1: i32) -> (i32, i32, i32) {
    %c0_i32 = arith.constant 0 : i32
    %c0_i32_0 = arith.constant 0 : i32
    return %arg0, %arg1, %c0_i32 : i32, i32, i32
  }
  func.func @transform_3(%arg0: i32, %arg1: i32) -> (i32, i32) {
    %c0_i32 = arith.constant 0 : i32
    %c0_i32_0 = arith.constant 0 : i32
    %c0_i32_1 = arith.constant 0 : i32
    return %c0_i32, %c0_i32_0 : i32, i32
  }
  func.func @transform_4(%arg0: i32, %arg1: i32) -> (i32, i32) {
    %c0_i32 = arith.constant 0 : i32
    %c0_i32_0 = arith.constant 0 : i32
    %c0_i32_1 = arith.constant 0 : i32
    return %c0_i32, %c0_i32_0 : i32, i32
  }
  func.func @transform_5(%arg0: i32, %arg1: i32) -> (i32, i32) {
    %c0_i32 = arith.constant 0 : i32
    %c0_i32_0 = arith.constant 0 : i32
    %c0_i32_1 = arith.constant 0 : i32
    return %c0_i32, %c0_i32_0 : i32, i32
  }
  func.func @transform_6(%arg0: i32, %arg1: i32) -> (i32, i32, i32) {
    %c0_i32 = arith.constant 0 : i32
    %c0_i32_0 = arith.constant 0 : i32
    return %arg0, %arg1, %c0_i32 : i32, i32, i32
  }
}

</mosaic_0001>

<llo_original>
// kernel: tpu_custom_call.1
$region0: #{tpu_custom_call.1}
  #allocation0 [shape = 'u32[]', space=smem, size = 0x4, offset = 0x4, fixed_abs, tag = 'smem constant byte address 0x4 - core index']
  #allocation1 [shape = 'u32[144,128]{1,0:T(1,128)}', space=vmem, size = 0x12000, scoped, tag = 'internal scratch']
  %s0 = inlined_call_operand.vmem [shape: f32[2,256,128], index: 0, kind: input, shape index: {}]
  %s1 = inlined_call_operand.vmem [shape: f32[2,256,1], index: 1, kind: input, shape index: {}]
  %s2 = inlined_call_operand.vmem [shape: f32[2,256,1], index: 2, kind: input, shape index: {}]
  %s3 = inlined_call_operand.vmem [shape: f32[1,128], index: 3, kind: input, shape index: {}]
  %s4 = inlined_call_operand.vmem [shape: f32[1,128], index: 4, kind: input, shape index: {}]
  %s5 = inlined_call_operand.vmem [shape: f32[1,128], index: 5, kind: input, shape index: {}]
  %s6 = inlined_call_operand.hbm [shape: f32[2,256,128], index: 6, kind: output, shape index: {}]
  %s7 = sld [smem:[#allocation0]]
  $region57: #{tpu_custom_call.1} parent=0
    _
  %s9 = ssub.s32 1, %s7
  %s10 = scalar_select 0, %s9, %s7
  $region1: #{tpu_custom_call.1} parent=0
    #allocation2 [shape = 'u8[65536]{0}', space=vmem, size = 0x10000, scoped, tag = 'output window, operand 0']
    #allocation3 [shape = 's32[2]{0}', space=sflag, size = 0x8, scoped, tag = 'scoped memory for tpu_custom_call.1']
    %11 = vsyncpa [#allocation3], 0
    %s12 = scalar_lea.sflag [#allocation3], 1
    %13 = vsyncpa %s12, 0
    loop: start=0, step=1, limit=10
    $region2: #{tpu_custom_call.1} parent=1 // loop_pre_header
      _
    $region3: #{tpu_custom_call.1} parent=1 // loop_header
      %s15 = sphi 0, %s19
      %p16 = scmp.ge.s32.totalorder %s15, 10
      %s22 = sphi 0, %s34
      %s23 = sphi 0, %s30
      %s24 = sphi 0, %s22
      %s25 = sphi 0, %s23
      %s26 = sphi 0, %s24
      %s27 = sphi 0, %s25
      %s39 = sphi 0, %s41
      %s42 = sphi 0, %s39
      %s43 = sphi 0, %s42
      %s59 = sphi 0, %s43
      %s67 = sphi 0, %s69
      %s70 = sphi 0, %s67
      %s71 = sphi 0, %s70
      %s87 = sphi 0, %s71
      %s95 = sphi 0, %s97
      %s98 = sphi 0, %s95
      %s99 = sphi 0, %s98
      %s115 = sphi 0, %s99
      %s119 = sphi 0, %s119
      %s121 = sphi 0, %s119
      %s122 = sphi 0, %s121
      %s136 = sphi 0, %s122
      %s140 = sphi 0, %s140
      %s142 = sphi 0, %s140
      %s143 = sphi 0, %s142
      %s157 = sphi 0, %s143
      %s161 = sphi 0, %s161
      %s163 = sphi 0, %s161
      %s164 = sphi 0, %s163
      %s178 = sphi 0, %s164
      %s186 = sphi 0, %s188
      %s189 = sphi 0, %s186
      %s190 = sphi 0, %s189
      %s206 = sphi 0, %s190
    $region4: #{tpu_custom_call.1} parent=1 // loop_header_branch
      %18 = sbr.rel (%p16) target = $region8
    $region5: #{tpu_custom_call.1} parent=1 // loop_body
      %s20 = ssub.s32 %s15, 1
      %s21 = ssub.s32 %s15, 2
      %s28 = sadd.s32 1, %s23
      %p29 = scmp.ge.s32.totalorder %s28, 4
      %s30 = scalar_select %p29, 0, %s28
      %s31 = sadd.s32 1, %s22
      %s32 = scalar_select %p29, %s31, %s22
      %p33 = scmp.ge.s32.totalorder %s32, 2
      %s34 = scalar_select %p33, 0, %s32
      %s35 = ssub.s32 %s22, %s34
      %s36 = ssub.s32 %s23, %s30
      %s37 = sor.u32 %s35, %s36
      %p38 = scmp.eq.s32.totalorder %s37, 0
      %s40 = sadd.s32 %s39, 1
      %s41 = scalar_select %p38, %s39, %s40
      %p44 = pneg %p38
      %p45 = scmp.eq.s32.totalorder %s15, 7
      %p46 = por %p44, %p45
      %p47 = scmp.ne.s32.totalorder %s39, %s42
      %p48 = scmp.eq.s32.totalorder %s15, 0
      %p49 = por %p47, %p48
      %p50 = scmp.ne.s32.totalorder %s39, %s42
      %p51 = scmp.eq.s32.totalorder %s20, 7
      %p52 = por %p50, %p51
      %p53 = scmp.ne.s32.totalorder %s42, %s43
      %p54 = scmp.eq.s32.totalorder %s20, 0
      %p55 = por %p53, %p54
      %p56 = scmp.ne.s32.totalorder %s42, %s43
      %p57 = scmp.eq.s32.totalorder %s21, 7
      %p58 = por %p56, %p57
      %p60 = scmp.ne.s32.totalorder %s43, %s59
      %p61 = scmp.eq.s32.totalorder %s21, 0
      %p62 = por %p60, %p61
      %s63 = ssub.s32 %s22, %s34
      %s64 = ssub.s32 %s23, %s30
      %s65 = sor.u32 %s63, %s64
      %p66 = scmp.eq.s32.totalorder %s65, 0
      %s68 = sadd.s32 %s67, 1
      %s69 = scalar_select %p66, %s67, %s68
      %p72 = pneg %p66
      %p73 = scmp.eq.s32.totalorder %s15, 7
      %p74 = por %p72, %p73
      %p75 = scmp.ne.s32.totalorder %s67, %s70
      %p76 = scmp.eq.s32.totalorder %s15, 0
      %p77 = por %p75, %p76
      %p78 = scmp.ne.s32.totalorder %s67, %s70
      %p79 = scmp.eq.s32.totalorder %s20, 7
      %p80 = por %p78, %p79
      %p81 = scmp.ne.s32.totalorder %s70, %s71
      %p82 = scmp.eq.s32.totalorder %s20, 0
      %p83 = por %p81, %p82
      %p84 = scmp.ne.s32.totalorder %s70, %s71
      %p85 = scmp.eq.s32.totalorder %s21, 7
      %p86 = por %p84, %p85
      %p88 = scmp.ne.s32.totalorder %s71, %s87
      %p89 = scmp.eq.s32.totalorder %s21, 0
      %p90 = por %p88, %p89
      %s91 = ssub.s32 %s22, %s34
      %s92 = ssub.s32 %s23, %s30
      %s93 = sor.u32 %s91, %s92
      %p94 = scmp.eq.s32.totalorder %s93, 0
      %s96 = sadd.s32 %s95, 1
      %s97 = scalar_select %p94, %s95, %s96
      %p100 = pneg %p94
      %p101 = scmp.eq.s32.totalorder %s15, 7
      %p102 = por %p100, %p101
      %p103 = scmp.ne.s32.totalorder %s95, %s98
      %p104 = scmp.eq.s32.totalorder %s15, 0
      %p105 = por %p103, %p104
      %p106 = scmp.ne.s32.totalorder %s95, %s98
      %p107 = scmp.eq.s32.totalorder %s20, 7
      %p108 = por %p106, %p107
      %p109 = scmp.ne.s32.totalorder %s98, %s99
      %p110 = scmp.eq.s32.totalorder %s20, 0
      %p111 = por %p109, %p110
      %p112 = scmp.ne.s32.totalorder %s98, %s99
      %p113 = scmp.eq.s32.totalorder %s21, 7
      %p114 = por %p112, %p113
      %p116 = scmp.ne.s32.totalorder %s99, %s115
      %p117 = scmp.eq.s32.totalorder %s21, 0
      %p118 = por %p116, %p117
      %s120 = sadd.s32 %s119, 1
      %p123 = scmp.eq.s32.totalorder %s15, 7
      %p124 = scmp.ne.s32.totalorder %s119, %s121
      %p125 = scmp.eq.s32.totalorder %s15, 0
      %p126 = por %p124, %p125
      %p127 = scmp.ne.s32.totalorder %s119, %s121
      %p128 = scmp.eq.s32.totalorder %s20, 7
      %p129 = por %p127, %p128
      %p130 = scmp.ne.s32.totalorder %s121, %s122
      %p131 = scmp.eq.s32.totalorder %s20, 0
      %p132 = por %p130, %p131
      %p133 = scmp.ne.s32.totalorder %s121, %s122
      %p134 = scmp.eq.s32.totalorder %s21, 7
      %p135 = por %p133, %p134
      %p137 = scmp.ne.s32.totalorder %s122, %s136
      %p138 = scmp.eq.s32.totalorder %s21, 0
      %p139 = por %p137, %p138
      %s141 = sadd.s32 %s140, 1
      %p144 = scmp.eq.s32.totalorder %s15, 7
      %p145 = scmp.ne.s32.totalorder %s140, %s142
      %p146 = scmp.eq.s32.totalorder %s15, 0
      %p147 = por %p145, %p146
      %p148 = scmp.ne.s32.totalorder %s140, %s142
      %p149 = scmp.eq.s32.totalorder %s20, 7
      %p150 = por %p148, %p149
      %p151 = scmp.ne.s32.totalorder %s142, %s143
      %p152 = scmp.eq.s32.totalorder %s20, 0
      %p153 = por %p151, %p152
      %p154 = scmp.ne.s32.totalorder %s142, %s143
      %p155 = scmp.eq.s32.totalorder %s21, 7
      %p156 = por %p154, %p155
      %p158 = scmp.ne.s32.totalorder %s143, %s157
      %p159 = scmp.eq.s32.totalorder %s21, 0
      %p160 = por %p158, %p159
      %s162 = sadd.s32 %s161, 1
      %p165 = scmp.eq.s32.totalorder %s15, 7
      %p166 = scmp.ne.s32.totalorder %s161, %s163
      %p167 = scmp.eq.s32.totalorder %s15, 0
      %p168 = por %p166, %p167
      %p169 = scmp.ne.s32.totalorder %s161, %s163
      %p170 = scmp.eq.s32.totalorder %s20, 7
      %p171 = por %p169, %p170
      %p172 = scmp.ne.s32.totalorder %s163, %s164
      %p173 = scmp.eq.s32.totalorder %s20, 0
      %p174 = por %p172, %p173
      %p175 = scmp.ne.s32.totalorder %s163, %s164
      %p176 = scmp.eq.s32.totalorder %s21, 7
      %p177 = por %p175, %p176
      %p179 = scmp.ne.s32.totalorder %s164, %s178
      %p180 = scmp.eq.s32.totalorder %s21, 0
      %p181 = por %p179, %p180
      %s182 = ssub.s32 %s22, %s34
      %s183 = ssub.s32 %s23, %s30
      %s184 = sor.u32 %s182, %s183
      %p185 = scmp.eq.s32.totalorder %s184, 0
      %s187 = sadd.s32 %s186, 1
      %s188 = scalar_select %p185, %s186, %s187
      %p191 = pneg %p185
      %p192 = scmp.eq.s32.totalorder %s15, 7
      %p193 = por %p191, %p192
      %p194 = scmp.ne.s32.totalorder %s186, %s189
      %p195 = scmp.eq.s32.totalorder %s15, 0
      %p196 = por %p194, %p195
      %p197 = scmp.ne.s32.totalorder %s186, %s189
      %p198 = scmp.eq.s32.totalorder %s20, 7
      %p199 = por %p197, %p198
      %p200 = scmp.ne.s32.totalorder %s189, %s190
      %p201 = scmp.eq.s32.totalorder %s20, 0
      %p202 = por %p200, %p201
      %p203 = scmp.ne.s32.totalorder %s189, %s190
      %p204 = scmp.eq.s32.totalorder %s21, 7
      %p205 = por %p203, %p204
      %p207 = scmp.ne.s32.totalorder %s190, %s206
      %p208 = scmp.eq.s32.totalorder %s21, 0
      %p209 = por %p207, %p208
      %p210 = scmp.le.s32.totalorder 1, %s15
      %p211 = scmp.lt.s32.totalorder %s15, 9
      %p212 = pnand %p210, %p211
      %p213 = pneg %p212
      // Predicated region
      $region9: #{tpu_custom_call.1} parent=5 // pred_check
        _
      $region10: #{tpu_custom_call.1} parent=5 // pred_check_branch
        %215 = sbr.rel (%p212) target = $region12
      $region11: #{tpu_custom_call.1} parent=5 // pred_region
        %s216 = ssub.s32 %s15, 1
        // Predicated region
        $region13: #{tpu_custom_call.1} parent=11 // pred_check
          %p217 = pneg %p132
        $region14: #{tpu_custom_call.1} parent=11 // pred_check_branch
          %219 = sbr.rel (%p217) target = $region16
        $region15: #{tpu_custom_call.1} parent=11 // pred_region
          _
        $region16: #{tpu_custom_call.1} parent=11 // pred_fallthru
          _
        // Predicated region
        $region17: #{tpu_custom_call.1} parent=11 // pred_check
          %p220 = pneg %p153
        $region18: #{tpu_custom_call.1} parent=11 // pred_check_branch
          %222 = sbr.rel (%p220) target = $region20
        $region19: #{tpu_custom_call.1} parent=11 // pred_region
          _
        $region20: #{tpu_custom_call.1} parent=11 // pred_fallthru
          _
        // Predicated region
        $region21: #{tpu_custom_call.1} parent=11 // pred_check
          %p223 = pneg %p174
        $region22: #{tpu_custom_call.1} parent=11 // pred_check_branch
          %225 = sbr.rel (%p223) target = $region24
        $region23: #{tpu_custom_call.1} parent=11 // pred_region
          _
        $region24: #{tpu_custom_call.1} parent=11 // pred_fallthru
          _
      $region12: #{tpu_custom_call.1} parent=5 // pred_fallthru
        _
      %p226 = scmp.lt.s32.totalorder %s15, 8
      // Predicated region
      $region25: #{tpu_custom_call.1} parent=5 // pred_check
        %p227 = pneg %p226
      $region26: #{tpu_custom_call.1} parent=5 // pred_check_branch
        %229 = sbr.rel (%p227) target = $region28
      $region27: #{tpu_custom_call.1} parent=5 // pred_region
        // Predicated region
        $region29: #{tpu_custom_call.1} parent=27 // pred_check
          %p230 = pneg %p49
        $region30: #{tpu_custom_call.1} parent=27 // pred_check_branch
          %232 = sbr.rel (%p230) target = $region32
        $region31: #{tpu_custom_call.1} parent=27 // pred_region
          %s233 = smul.u32 8, %s23
          %p234 = scmp.lt.s32.totalorder %s22, 1
          %s235 = scalar_select %p234, %s22, 1
          %p236 = scmp.lt.s32.totalorder %s233, 31
          %s237 = scalar_select %p236, %s233, 31
          %s238 = smul.addr %s235, 32
          %s239 = sadd.s32 %s237, %s238
          %s240 = smul.addr %s239, 8
          %s241 = scalar_lea.vmem %s0, %s240
          %s242 = smul.u32 8, %s23
        $region32: #{tpu_custom_call.1} parent=27 // pred_fallthru
          _
        // Predicated region
        $region33: #{tpu_custom_call.1} parent=27 // pred_check
          %p243 = pneg %p77
        $region34: #{tpu_custom_call.1} parent=27 // pred_check_branch
          %245 = sbr.rel (%p243) target = $region36
        $region35: #{tpu_custom_call.1} parent=27 // pred_region
          %s246 = smul.u32 8, %s23
          %p247 = scmp.lt.s32.totalorder %s22, 1
          %s248 = scalar_select %p247, %s22, 1
          %p249 = scmp.lt.s32.totalorder %s246, 31
          %s250 = scalar_select %p249, %s246, 31
          %s251 = smul.addr %s248, 32
          %s252 = sadd.s32 %s250, %s251
          %s253 = smul.addr %s252, 8
          %s254 = scalar_lea.vmem %s1, %s253
          %s255 = smul.u32 8, %s23
        $region36: #{tpu_custom_call.1} parent=27 // pred_fallthru
          _
        // Predicated region
        $region37: #{tpu_custom_call.1} parent=27 // pred_check
          %p256 = pneg %p105
        $region38: #{tpu_custom_call.1} parent=27 // pred_check_branch
          %258 = sbr.rel (%p256) target = $region40
        $region39: #{tpu_custom_call.1} parent=27 // pred_region
          %s259 = smul.u32 8, %s23
          %p260 = scmp.lt.s32.totalorder %s22, 1
          %s261 = scalar_select %p260, %s22, 1
          %p262 = scmp.lt.s32.totalorder %s259, 31
          %s263 = scalar_select %p262, %s259, 31
          %s264 = smul.addr %s261, 32
          %s265 = sadd.s32 %s263, %s264
          %s266 = smul.addr %s265, 8
          %s267 = scalar_lea.vmem %s2, %s266
          %s268 = smul.u32 8, %s23
        $region40: #{tpu_custom_call.1} parent=27 // pred_fallthru
          _
      $region28: #{tpu_custom_call.1} parent=5 // pred_fallthru
        _
      %p269 = scmp.le.s32.totalorder 1, %s15
      %p270 = scmp.lt.s32.totalorder %s15, 9
      %p271 = pnand %p269, %p270
      %p272 = pneg %p271
      // Predicated region
      $region41: #{tpu_custom_call.1} parent=5 // pred_check
        _
      $region42: #{tpu_custom_call.1} parent=5 // pred_check_branch
        %274 = sbr.rel (%p271) target = $region44
      $region43: #{tpu_custom_call.1} parent=5 // pred_region
        %s275 = ssub.s32 %s15, 1
        %s276 = smul.u32 8, %s25
        %p277 = scmp.lt.s32.totalorder %s24, 1
        %s278 = scalar_select %p277, %s24, 1
        %p279 = scmp.lt.s32.totalorder %s276, 31
        %s280 = scalar_select %p279, %s276, 31
        %s281 = smul.addr %s278, 32
        %s282 = sadd.s32 %s280, %s281
        %s283 = smul.addr %s282, 8
        %s284 = scalar_lea.vmem %s0, %s283
        %p285 = pneg %p55
        %p286 = pneg %p52
        %s287 = smul.u32 8, %s25
        %p288 = scmp.lt.s32.totalorder %s24, 1
        %s289 = scalar_select %p288, %s24, 1
        %p290 = scmp.lt.s32.totalorder %s287, 31
        %s291 = scalar_select %p290, %s287, 31
        %s292 = smul.addr %s289, 32
        %s293 = sadd.s32 %s291, %s292
        %s294 = smul.addr %s293, 8
        %s295 = scalar_lea.vmem %s1, %s294
        %p296 = pneg %p83
        %p297 = pneg %p80
        %s298 = smul.u32 8, %s25
        %p299 = scmp.lt.s32.totalorder %s24, 1
        %s300 = scalar_select %p299, %s24, 1
        %p301 = scmp.lt.s32.totalorder %s298, 31
        %s302 = scalar_select %p301, %s298, 31
        %s303 = smul.addr %s300, 32
        %s304 = sadd.s32 %s302, %s303
        %s305 = smul.addr %s304, 8
        %s306 = scalar_lea.vmem %s2, %s305
        %p307 = pneg %p111
        %p308 = pneg %p108
        %p309 = pneg %p132
        %p310 = pneg %p129
        %p311 = pneg %p153
        %p312 = pneg %p150
        %p313 = pneg %p174
        %p314 = pneg %p171
        %p315 = pneg %p202
        %p316 = pneg %p199
        %s317 = sand.u32 %s189, 1
        %s318 = scalar_lea.sflag [#allocation3], %s317
        %s319 = sand.u32 %s189, 1
        %s320 = smul.addr %s319, 64
        %s321 = scalar_lea.vmem [#allocation2], %s320
        %s322 = smul.u32 8, %s25
        %p323 = scmp.lt.s32.totalorder %s24, 1
        %s324 = scalar_select %p323, %s24, 1
        %p325 = scmp.lt.s32.totalorder %s322, 31
        %s326 = scalar_select %p325, %s322, 31
        %s327 = smul.addr %s324, 32
        %s328 = sadd.s32 %s326, %s327
        %s329 = smul.addr %s328, 8
        %s330 = scalar_lea.vmem %s0, %s329
        %s331 = smul.u32 8, %s25
        %s332 = smul.u32 8, %s25
        %p333 = scmp.lt.s32.totalorder %s24, 1
        %s334 = scalar_select %p333, %s24, 1
        %p335 = scmp.lt.s32.totalorder %s332, 31
        %s336 = scalar_select %p335, %s332, 31
        %s337 = smul.addr %s334, 32
        %s338 = sadd.s32 %s336, %s337
        %s339 = smul.addr %s338, 8
        %s340 = scalar_lea.vmem %s1, %s339
        %s341 = smul.u32 8, %s25
        %s342 = smul.u32 8, %s25
        %p343 = scmp.lt.s32.totalorder %s24, 1
        %s344 = scalar_select %p343, %s24, 1
        %p345 = scmp.lt.s32.totalorder %s342, 31
        %s346 = scalar_select %p345, %s342, 31
        %s347 = smul.addr %s344, 32
        %s348 = sadd.s32 %s346, %s347
        %s349 = smul.addr %s348, 8
        %s350 = scalar_lea.vmem %s2, %s349
        %s351 = smul.u32 8, %s25
        %s352 = smul.u32 8, %s25
        %v353 = vld [vmem:[%s330] sm:$0xff]
        %v354 = vld [vmem:[%s330 + $0x8] sm:$0xff]
        %v355 = vld [vmem:[%s330 + $0x10] sm:$0xff]
        %v356 = vld [vmem:[%s330 + $0x18] sm:$0xff]
        %v357 = vld [vmem:[%s330 + $0x20] sm:$0xff]
        %v358 = vld [vmem:[%s330 + $0x28] sm:$0xff]
        %v359 = vld [vmem:[%s330 + $0x30] sm:$0xff]
        %v360 = vld [vmem:[%s330 + $0x38] sm:$0xff]
        %v361 = vld [vmem:[%s340] sm:$0xff]
        %v362 = vld [vmem:[%s340 + $0x8] sm:$0xff]
        %v363 = vld [vmem:[%s340 + $0x10] sm:$0xff]
        %v364 = vld [vmem:[%s340 + $0x18] sm:$0xff]
        %v365 = vld [vmem:[%s340 + $0x20] sm:$0xff]
        %v366 = vld [vmem:[%s340 + $0x28] sm:$0xff]
        %v367 = vld [vmem:[%s340 + $0x30] sm:$0xff]
        %v368 = vld [vmem:[%s340 + $0x38] sm:$0xff]
        %v369 = vld [vmem:[%s350] sm:$0xff]
        %v370 = vld [vmem:[%s350 + $0x8] sm:$0xff]
        %v371 = vld [vmem:[%s350 + $0x10] sm:$0xff]
        %v372 = vld [vmem:[%s350 + $0x18] sm:$0xff]
        %v373 = vld [vmem:[%s350 + $0x20] sm:$0xff]
        %v374 = vld [vmem:[%s350 + $0x28] sm:$0xff]
        %v375 = vld [vmem:[%s350 + $0x30] sm:$0xff]
        %v376 = vld [vmem:[%s350 + $0x38] sm:$0xff]
        %v377 = vld [vmem:[%s3] sm:$0x1]
        %v378 = vld [vmem:[%s4] sm:$0x1]
        %v379 = vld [vmem:[%s5] sm:$0x1]
        %v381 = vlaneseq
        %v382 = vshrl.u32 %v381, 7
        %v383 = vsub.s32 0, %v382
        %v384 = vrot.slane %v378, %v383
        %387 = vset.pattern.permute.xlu0 0
        %388 = vperm.xlu0 %387, %v369
        %v389 = vpop.permute.xlu0 %388
        %392 = vset.pattern.permute.xlu0 0
        %393 = vperm.xlu0 %392, %v370
        %v394 = vpop.permute.xlu0 %393
        %397 = vset.pattern.permute.xlu0 0
        %398 = vperm.xlu0 %397, %v371
        %v399 = vpop.permute.xlu0 %398
        %402 = vset.pattern.permute.xlu0 0
        %403 = vperm.xlu0 %402, %v372
        %v404 = vpop.permute.xlu0 %403
        %407 = vset.pattern.permute.xlu0 0
        %408 = vperm.xlu0 %407, %v373
        %v409 = vpop.permute.xlu0 %408
        %412 = vset.pattern.permute.xlu0 0
        %413 = vperm.xlu0 %412, %v374
        %v414 = vpop.permute.xlu0 %413
        %417 = vset.pattern.permute.xlu0 0
        %418 = vperm.xlu0 %417, %v375
        %v419 = vpop.permute.xlu0 %418
        %422 = vset.pattern.permute.xlu0 0
        %423 = vperm.xlu0 %422, %v376
        %v424 = vpop.permute.xlu0 %423
        %v426 = vmul.f32 %v384, %v389
        %v427 = vmul.f32 %v384, %v394
        %v428 = vmul.f32 %v384, %v399
        %v429 = vmul.f32 %v384, %v404
        %v430 = vmul.f32 %v384, %v409
        %v431 = vmul.f32 %v384, %v414
        %v432 = vmul.f32 %v384, %v419
        %v433 = vmul.f32 %v384, %v424
        %435 = vset.pattern.permute.xlu0 0
        %436 = vperm.xlu0 %435, %v361
        %v437 = vpop.permute.xlu0 %436
        %440 = vset.pattern.permute.xlu0 0
        %441 = vperm.xlu0 %440, %v362
        %v442 = vpop.permute.xlu0 %441
        %445 = vset.pattern.permute.xlu0 0
        %446 = vperm.xlu0 %445, %v363
        %v447 = vpop.permute.xlu0 %446
        %450 = vset.pattern.permute.xlu0 0
        %451 = vperm.xlu0 %450, %v364
        %v452 = vpop.permute.xlu0 %451
        %455 = vset.pattern.permute.xlu0 0
        %456 = vperm.xlu0 %455, %v365
        %v457 = vpop.permute.xlu0 %456
        %460 = vset.pattern.permute.xlu0 0
        %461 = vperm.xlu0 %460, %v366
        %v462 = vpop.permute.xlu0 %461
        %465 = vset.pattern.permute.xlu0 0
        %466 = vperm.xlu0 %465, %v367
        %v467 = vpop.permute.xlu0 %466
        %470 = vset.pattern.permute.xlu0 0
        %471 = vperm.xlu0 %470, %v368
        %v472 = vpop.permute.xlu0 %471
        %v475 = vlaneseq
        %v476 = vshrl.u32 %v475, 7
        %v477 = vsub.s32 0, %v476
        %v478 = vrot.slane %v377, %v477
        %v480 = vmul.f32 %v437, %v478
        %v481 = vmul.f32 %v442, %v478
        %v482 = vmul.f32 %v447, %v478
        %v483 = vmul.f32 %v452, %v478
        %v484 = vmul.f32 %v457, %v478
        %v485 = vmul.f32 %v462, %v478
        %v486 = vmul.f32 %v467, %v478
        %v487 = vmul.f32 %v472, %v478
        %v488 = vsub.f32 %v426, %v480
        %v489 = vsub.f32 %v427, %v481
        %v490 = vsub.f32 %v428, %v482
        %v491 = vsub.f32 %v429, %v483
        %v492 = vsub.f32 %v430, %v484
        %v493 = vsub.f32 %v431, %v485
        %v494 = vsub.f32 %v432, %v486
        %v495 = vsub.f32 %v433, %v487
        %v496 = vmul.f32 %v488, 1.442695
        %v497 = vpow.pop %v496
        %v498 = vmul.f32 %v489, 1.442695
        %v499 = vpow.pop %v498
        %v500 = vmul.f32 %v490, 1.442695
        %v501 = vpow.pop %v500
        %v502 = vmul.f32 %v491, 1.442695
        %v503 = vpow.pop %v502
        %v504 = vmul.f32 %v492, 1.442695
        %v505 = vpow.pop %v504
        %v506 = vmul.f32 %v493, 1.442695
        %v507 = vpow.pop %v506
        %v508 = vmul.f32 %v494, 1.442695
        %v509 = vpow.pop %v508
        %v510 = vmul.f32 %v495, 1.442695
        %v511 = vpow.pop %v510
        %vm512 = vcmp.gt.f32.partialorder %v361, 0.0
        %vm513 = vcmp.gt.f32.partialorder %v362, 0.0
        %vm514 = vcmp.gt.f32.partialorder %v363, 0.0
        %vm515 = vcmp.gt.f32.partialorder %v364, 0.0
        %vm516 = vcmp.gt.f32.partialorder %v365, 0.0
        %vm517 = vcmp.gt.f32.partialorder %v366, 0.0
        %vm518 = vcmp.gt.f32.partialorder %v367, 0.0
        %vm519 = vcmp.gt.f32.partialorder %v368, 0.0
        %v520 = vsel %vm512, 1, 0
        %v521 = vsel %vm513, 1, 0
        %v522 = vsel %vm514, 1, 0
        %v523 = vsel %vm515, 1, 0
        %v524 = vsel %vm516, 1, 0
        %v525 = vsel %vm517, 1, 0
        %v526 = vsel %vm518, 1, 0
        %v527 = vsel %vm519, 1, 0
        %528 = vset.pattern.permute.xlu0 0
        %529 = vperm.xlu0 %528, %v520
        %v530 = vpop.permute.xlu0 %529
        %531 = vset.pattern.permute.xlu0 0
        %532 = vperm.xlu0 %531, %v521
        %v533 = vpop.permute.xlu0 %532
        %534 = vset.pattern.permute.xlu0 0
        %535 = vperm.xlu0 %534, %v522
        %v536 = vpop.permute.xlu0 %535
        %537 = vset.pattern.permute.xlu0 0
        %538 = vperm.xlu0 %537, %v523
        %v539 = vpop.permute.xlu0 %538
        %540 = vset.pattern.permute.xlu0 0
        %541 = vperm.xlu0 %540, %v524
        %v542 = vpop.permute.xlu0 %541
        %543 = vset.pattern.permute.xlu0 0
        %544 = vperm.xlu0 %543, %v525
        %v545 = vpop.permute.xlu0 %544
        %546 = vset.pattern.permute.xlu0 0
        %547 = vperm.xlu0 %546, %v526
        %v548 = vpop.permute.xlu0 %547
        %549 = vset.pattern.permute.xlu0 0
        %550 = vperm.xlu0 %549, %v527
        %v551 = vpop.permute.xlu0 %550
        %vm552 = vcmp.eq.s32.totalorder %v530, 1
        %vm553 = vcmp.eq.s32.totalorder %v533, 1
        %vm554 = vcmp.eq.s32.totalorder %v536, 1
        %vm555 = vcmp.eq.s32.totalorder %v539, 1
        %vm556 = vcmp.eq.s32.totalorder %v542, 1
        %vm557 = vcmp.eq.s32.totalorder %v545, 1
        %vm558 = vcmp.eq.s32.totalorder %v548, 1
        %vm559 = vcmp.eq.s32.totalorder %v551, 1
        %v561 = vlaneseq
        %v562 = vshrl.u32 %v561, 7
        %v563 = vsub.s32 0, %v562
        %v564 = vrot.slane %v379, %v563
        %v566 = vsel %vm552, %v497, %v564
        %v567 = vsel %vm553, %v499, %v564
        %v568 = vsel %vm554, %v501, %v564
        %v569 = vsel %vm555, %v503, %v564
        %v570 = vsel %vm556, %v505, %v564
        %v571 = vsel %vm557, %v507, %v564
        %v572 = vsel %vm558, %v509, %v564
        %v573 = vsel %vm559, %v511, %v564
        %v574 = vmul.f32 %v566, %v353
        %v575 = vmul.f32 %v567, %v354
        %v576 = vmul.f32 %v568, %v355
        %v577 = vmul.f32 %v569, %v356
        %v578 = vmul.f32 %v570, %v357
        %v579 = vmul.f32 %v571, %v358
        %v580 = vmul.f32 %v572, %v359
        %v581 = vmul.f32 %v573, %v360
        %582 = vst [vmem:[%s321] sm:$0xff] %v574
        %583 = vst [vmem:[%s321 + $0x8] sm:$0xff] %v575
        %584 = vst [vmem:[%s321 + $0x10] sm:$0xff] %v576
        %585 = vst [vmem:[%s321 + $0x18] sm:$0xff] %v577
        %586 = vst [vmem:[%s321 + $0x20] sm:$0xff] %v578
        %587 = vst [vmem:[%s321 + $0x28] sm:$0xff] %v579
        %588 = vst [vmem:[%s321 + $0x30] sm:$0xff] %v580
        %589 = vst [vmem:[%s321 + $0x38] sm:$0xff] %v581
        %s590 = sand.u32 %s189, 1
        %s591 = scalar_lea.sflag [#allocation3], %s590
        %s592 = sand.u32 %s189, 1
        %s593 = smul.addr %s592, 64
        %s594 = scalar_lea.vmem [#allocation2], %s593
        // Predicated region
        $region45: #{tpu_custom_call.1} parent=43 // pred_check
          %p595 = pneg %p199
        $region46: #{tpu_custom_call.1} parent=43 // pred_check_branch
          %597 = sbr.rel (%p595) target = $region48
        $region47: #{tpu_custom_call.1} parent=43 // pred_region
          %s598 = smul.u32 8, %s25
          %s600 = ssub.s32 1024, 1024
          %601 = vsyncadd %s591, %s600
          %s602 = smul.addr %s24, 32
          %s603 = sadd.s32 %s598, %s602
          %s604 = smul.addr %s603, 128
          %s605 = scalar_lea.hbm %s6, %s604
          %s606 = sshll.u32 %s594, 4
          %s607 = int_to_ptr.vmem [resolvable:$true] %s606
          %612 = dma.vmem_to_hbm [thread:$0]  %s607, 1024, %s605, %s591, 128, 128, 8
        $region48: #{tpu_custom_call.1} parent=43 // pred_fallthru
          _
      $region44: #{tpu_custom_call.1} parent=5 // pred_fallthru
        _
      %p613 = scmp.le.s32.totalorder 2, %s15
      // Predicated region
      $region49: #{tpu_custom_call.1} parent=5 // pred_check
        %p614 = pneg %p613
      $region50: #{tpu_custom_call.1} parent=5 // pred_check_branch
        %616 = sbr.rel (%p614) target = $region52
      $region51: #{tpu_custom_call.1} parent=5 // pred_region
        %s617 = ssub.s32 %s15, 2
        // Predicated region
        $region53: #{tpu_custom_call.1} parent=51 // pred_check
          %p618 = pneg %p205
        $region54: #{tpu_custom_call.1} parent=51 // pred_check_branch
          %620 = sbr.rel (%p618) target = $region56
        $region55: #{tpu_custom_call.1} parent=51 // pred_region
          %s621 = sand.u32 %s190, 1
          %s622 = scalar_lea.sflag [#allocation3], %s621
          %s623 = sand.u32 %s190, 1
          %s624 = smul.addr %s623, 64
          %s625 = scalar_lea.vmem [#allocation2], %s624
          %626 = dma.done %s622, 1024
        $region56: #{tpu_custom_call.1} parent=51 // pred_fallthru
          _
      $region52: #{tpu_custom_call.1} parent=5 // pred_fallthru
        _
    $region6: #{tpu_custom_call.1} parent=1 // loop_footer
      %s19 = sadd.s32 1, %s15
    $region7: #{tpu_custom_call.1} parent=1 // loop_footer_branch
      %14 = sbr.rel target = $region3
    $region8: #{tpu_custom_call.1} parent=1 // loop_exit
      _
    %627 = vsyncpa [#allocation3], 1
    %s628 = scalar_lea.sflag [#allocation3], 1
    %629 = vsyncpa %s628, 1

</llo_original>
